<compile_context>
chip_gen: v6e
topology: v6e:2x2x1
jax: 0.10.0
libtpu: 0.0.40
codegen_flags: <defaults>
</compile_context>

<pallas_src>
import functools

import jax
import jax.numpy as jnp
from jax.experimental import pallas as pl
from jax.experimental.pallas import tpu as pltpu


def _ordinal_loss_kernel(x_ref, t_ref, o_ref, acc_ref, *, inv_nc):
    # x_ref : (TILE_N, C) probabilities (any float dtype) in VMEM
    # t_ref : (TILE_N, 1) int32 targets in VMEM
    # o_ref : (1, 1) float32 scalar loss in SMEM
    # acc_ref: (TILE_N, C) float32 accumulator scratch in VMEM (carried over grid)
    i = pl.program_id(0)

    @pl.when(i == 0)
    def _init():
        acc_ref[...] = jnp.zeros_like(acc_ref)

    x = x_ref[...].astype(jnp.float32)                   # upcast in-kernel (cheap VALU)
    t = t_ref[...]                                       # (TILE_N, 1) int32
    tn, c = x.shape

    # Ordinal mask: column index < target  (range_tensor < target.unsqueeze(1)).
    col = jax.lax.broadcasted_iota(jnp.int32, (tn, c), 1)

    # Fused BCE: y is binary, so y*log(x) + (1-y)*log(1-x) == log(where(y, x, 1-x)).
    sel = jnp.where(col < t, x, 1.0 - x)
    per_elem = -jnp.maximum(jnp.log(sel), -100.0)        # PyTorch's log clamp at -100

    # Deferred reduction: pure elementwise accumulation in steady state.
    acc_ref[...] += per_elem

    @pl.when(i == pl.num_programs(0) - 1)
    def _finalize():
        o_ref[0, 0] = jnp.sum(acc_ref[...]) * inv_nc     # single XLU reduce at the end


def _round_up(a, b):
    return (a + b - 1) // b * b


def ordinal_loss(inp, target, *, tile_cap=512):
    """inp: (N, C) float probabilities; target: (N,) integer labels. Returns scalar f32."""
    n, c = inp.shape
    t2 = target.astype(jnp.int32).reshape(n, 1)
    in_bytes = inp.dtype.itemsize

    # Row tile: multiple of 8, capped so (2 x-buffers + 2 tgt-buffers + f32 acc)
    # stays well under the smallest default scoped VMEM (v5e: 16 MiB) and under
    # v7x's 64 MiB physical VMEM.
    budget = 6 * 1024 * 1024
    per_row = 2 * c * in_bytes + c * 4 + 2 * 4
    tile_n = max(8, min(tile_cap, (budget // max(per_row, 1)) // 8 * 8))
    tile_n = min(tile_n, _round_up(n, 8))
    n_pad = _round_up(n, tile_n)

    if n_pad != n:
        # Padding rows contribute exactly zero loss: x = 1, target = C
        # => mask all-ones => log(1) = 0 => per-element loss 0.
        pad = n_pad - n
        inp = jnp.concatenate([inp, jnp.ones((pad, c), inp.dtype)], axis=0)
        t2 = jnp.concatenate([t2, jnp.full((pad, 1), c, jnp.int32)], axis=0)

    num_tiles = n_pad // tile_n
    kernel = functools.partial(_ordinal_loss_kernel, inv_nc=1.0 / float(n * c))

    out = pl.pallas_call(
        kernel,
        out_shape=jax.ShapeDtypeStruct((1, 1), jnp.float32),
        grid=(num_tiles,),
        in_specs=[
            pl.BlockSpec((tile_n, c), lambda i: (i, 0)),   # x tile
            pl.BlockSpec((tile_n, 1), lambda i: (i, 0)),   # target tile
        ],
        out_specs=pl.BlockSpec(memory_space=pltpu.SMEM),   # (1,1) scalar, written at last step
        scratch_shapes=[pltpu.VMEM((tile_n, c), jnp.float32)],
        compiler_params=pltpu.CompilerParams(
            dimension_semantics=("arbitrary",)),           # carried accumulator
        cost_estimate=pl.CostEstimate(
            flops=6 * n * c,
            transcendentals=n * c,
            bytes_accessed=n * c * in_bytes + n * 4 + 4),
    )(inp, t2)
    return out[0, 0]


def ordinal_loss_ref(inp, target):
    """Pure-JAX reference mirroring the PyTorch module."""
    n, c = inp.shape
    x = inp.astype(jnp.float32)
    col = jnp.arange(c)[None, :]
    y = (col < target[:, None]).astype(jnp.float32)
    log_x = jnp.maximum(jnp.log(x), -100.0)
    log_1mx = jnp.maximum(jnp.log(1.0 - x), -100.0)
    return jnp.mean(-(y * log_x + (1.0 - y) * log_1mx))


if __name__ == "__main__":
    key = jax.random.PRNGKey(0)

    # Case 1: small shapes consistent with the module (batch=8, classes=16).
    k1, k2, k3, k4 = jax.random.split(key, 4)
    N, C = 8, 16
    x = jax.nn.sigmoid(jax.random.normal(k1, (N, C), dtype=jnp.float32))
    target = jax.random.randint(k2, (N,), 0, C + 1, dtype=jnp.int32)

    loss = ordinal_loss(x, target)
    jax.block_until_ready(loss)
    ref = ordinal_loss_ref(x, target)
    assert jnp.allclose(loss, ref, rtol=1e-5, atol=1e-5), (loss, ref)

    # Case 2: exercise the multi-tile pipeline + zero-contribution row padding.
    N2, C2 = 300, 16
    x2 = jax.nn.sigmoid(jax.random.normal(k3, (N2, C2), dtype=jnp.float32))
    target2 = jax.random.randint(k4, (N2,), 0, C2 + 1, dtype=jnp.int32)

    loss2 = ordinal_loss(x2, target2, tile_cap=64)   # -> 5 grid steps, 20 pad rows
    jax.block_until_ready(loss2)
    ref2 = ordinal_loss_ref(x2, target2)
    assert jnp.allclose(loss2, ref2, rtol=1e-5, atol=1e-5), (loss2, ref2)

    print("KERNEL_OK")
</pallas_src>

<mosaic_0001>
module attributes {stable_mosaic.version = 11 : i64} {
  func.func @_ordinal_loss_kernel(%arg0: i32, %arg1: memref<8x16xf32, #tpu.memory_space<vmem>>, %arg2: memref<8x1xi32, #tpu.memory_space<vmem>>, %arg3: memref<1x1xf32, #tpu.memory_space<smem>>, %arg4: memref<8x16xf32, #tpu.memory_space<vmem>>) attributes {dimension_semantics = [#tpu.dimension_semantics<arbitrary>], iteration_bounds = array<i64: 1>, scalar_prefetch = 0 : i64, scratch_operands = 1 : i64, tpu.core_type = #tpu.core_type<tc>, window_params = [{transform_indices = @transform_0, window_bounds = array<i64: 8, 16>}, {transform_indices = @transform_1, window_bounds = array<i64: 8, 1>}, {transform_indices = @transform_2, window_bounds = array<i64: 1, 1>}]} {
    %c0_i32 = arith.constant 0 : i32
    %0 = arith.cmpi eq, %arg0, %c0_i32 : i32
    %1 = arith.extui %0 : i1 to i32
    %c0_i32_0 = arith.constant 0 : i32
    %2 = arith.cmpi ne, %1, %c0_i32_0 : i32
    scf.if %2 {
      %cst_12 = arith.constant 0.000000e+00 : f32
      %22 = vector.broadcast %cst_12 : f32 to vector<8x16xf32>
      %c0_13 = arith.constant 0 : index
      %c0_14 = arith.constant 0 : index
      %23 = vector.load %arg4[%c0_13, %c0_14] : memref<8x16xf32, #tpu.memory_space<vmem>>, vector<8x16xf32>
      tpu.vector_store %arg4[%c0_13, %c0_14], %22 {strides = array<i32>} : memref<8x16xf32, #tpu.memory_space<vmem>>, vector<8x16xf32>,
    } else {
    }
    %c0 = arith.constant 0 : index
    %c0_1 = arith.constant 0 : index
    %3 = vector.load %arg1[%c0, %c0_1] : memref<8x16xf32, #tpu.memory_space<vmem>>, vector<8x16xf32>
    %c0_2 = arith.constant 0 : index
    %c0_3 = arith.constant 0 : index
    %4 = vector.load %arg2[%c0_2, %c0_3] : memref<8x1xi32, #tpu.memory_space<vmem>>, vector<8x1xi32>
    %5 = tpu.iota {dimensions = array<i32: 1>} : vector<8x16xi32>
    %6 = vector.broadcast %4 : vector<8x1xi32> to vector<8x16xi32>
    %7 = arith.cmpi slt, %5, %6 : vector<8x16xi32>
    %cst = arith.constant 1.000000e+00 : f32
    %8 = vector.broadcast %cst : f32 to vector<8x16xf32>
    %9 = arith.subf %8, %3 : vector<8x16xf32>
    %10 = arith.select %7, %3, %9 : vector<8x16xi1>, vector<8x16xf32>
    %11 = math.log %10 : vector<8x16xf32>
    %cst_4 = arith.constant -1.000000e+02 : f32
    %12 = vector.broadcast %cst_4 : f32 to vector<8x16xf32>
    %13 = arith.maximumf %11, %12 : vector<8x16xf32>
    %cst_5 = arith.constant 0.000000e+00 : f32
    %14 = vector.broadcast %cst_5 : f32 to vector<8x16xf32>
    %15 = arith.subf %14, %13 : vector<8x16xf32>
    %c0_6 = arith.constant 0 : index
    %c0_7 = arith.constant 0 : index
    %16 = vector.load %arg4[%c0_6, %c0_7] : memref<8x16xf32, #tpu.memory_space<vmem>>, vector<8x16xf32>
    %17 = arith.addf %16, %15 : vector<8x16xf32>
    %c0_8 = arith.constant 0 : index
    %c0_9 = arith.constant 0 : index
    %18 = vector.load %arg4[%c0_8, %c0_9] : memref<8x16xf32, #tpu.memory_space<vmem>>, vector<8x16xf32>
    tpu.vector_store %arg4[%c0_8, %c0_9], %17 {strides = array<i32>} : memref<8x16xf32, #tpu.memory_space<vmem>>, vector<8x16xf32>,
    %c0_i32_10 = arith.constant 0 : i32
    %19 = arith.cmpi eq, %arg0, %c0_i32_10 : i32
    %20 = arith.extui %19 : i1 to i32
    %c0_i32_11 = arith.constant 0 : i32
    %21 = arith.cmpi ne, %20, %c0_i32_11 : i32
    scf.if %21 {
      %c0_12 = arith.constant 0 : index
      %c0_13 = arith.constant 0 : index
      %22 = vector.load %arg4[%c0_12, %c0_13] : memref<8x16xf32, #tpu.memory_space<vmem>>, vector<8x16xf32>
      %23 = vector.shape_cast %22 : vector<8x16xf32> to vector<1x8x16xf32>
      %cst_14 = arith.constant dense<0.000000e+00> : vector<1xf32>
      %24 = vector.multi_reduction <add>, %23, %cst_14 [1, 2] : vector<1x8x16xf32> to vector<1xf32>
      %25 = vector.shape_cast %24 : vector<1xf32> to vector<1x1x1xf32>
      %26 = vector.extract %25[0, 0, 0] : f32 from vector<1x1x1xf32>
      %cst_15 = arith.constant 7.812500e-03 : f32
      %27 = arith.mulf %26, %cst_15 : f32
      %c0_16 = arith.constant 0 : index
      %c0_17 = arith.constant 0 : index
      %28 = memref.load %arg3[%c0_16, %c0_17] : memref<1x1xf32, #tpu.memory_space<smem>>
      memref.store %27, %arg3[%c0_16, %c0_17] : memref<1x1xf32, #tpu.memory_space<smem>>
    } else {
    }
    return
  }
  func.func @transform_0(%arg0: i32) -> (i32, i32) {
    %c0_i32 = arith.constant 0 : i32
    %c0_i32_0 = arith.constant 0 : i32
    return %arg0, %c0_i32 : i32, i32
  }
  func.func @transform_1(%arg0: i32) -> (i32, i32) {
    %c0_i32 = arith.constant 0 : i32
    %c0_i32_0 = arith.constant 0 : i32
    return %arg0, %c0_i32 : i32, i32
  }
  func.func @transform_2(%arg0: i32) -> (i32, i32) {
    %c0_i32 = arith.constant 0 : i32
    %c0_i32_0 = arith.constant 0 : i32
    %c0_i32_1 = arith.constant 0 : i32
    return %c0_i32, %c0_i32_0 : i32, i32
  }
}

</mosaic_0001>

<llo_original>
// kernel: tpu_custom_call.1
$region0: #{tpu_custom_call.1}
  #allocation0 [shape = 'u32[]', space=smem, size = 0x4, offset = 0x4, fixed_abs, tag = 'smem constant byte address 0x4 - core index']
  #allocation1 [shape = 'u32[144,128]{1,0:T(1,128)}', space=vmem, size = 0x12000, scoped, tag = 'internal scratch']
  #allocation2 [shape = 'f32[8,16]{1,0:T(8,128)}', space=vmem, size = 0x1000, scoped, tag = 'scratch operand']
  %s0 = inlined_call_operand.vmem [shape: f32[8,16], index: 0, kind: input, shape index: {}]
  %s1 = inlined_call_operand.vmem [shape: s32[8,1], index: 1, kind: input, shape index: {}]
  %s2 = inlined_call_operand.hbm [shape: f32[1,1], index: 2, kind: output, shape index: {}]
  %s3 = sld [smem:[#allocation0]]
  $region26: #{tpu_custom_call.1} parent=0
    _
  %s5 = ssub.s32 1, %s3
  %s6 = scalar_select 0, %s5, %s3
  $region1: #{tpu_custom_call.1} parent=0
    #allocation3 [shape = 'u8[512]{0}', space=smem, size = 0x200, scoped, tag = 'output window, operand 0, single buffered']
    #allocation4 [shape = 's32[1]{0}', space=sflag, size = 0x4, scoped, tag = 'scoped memory for tpu_custom_call.1']
    %7 = vsyncpa [#allocation4], 0
    // Predicated region
    $region2: #{tpu_custom_call.1} parent=1 // pred_check
      _
    $region3: #{tpu_custom_call.1} parent=1 // pred_check_branch
      %9 = sbr.rel (0) target = $region5
    $region4: #{tpu_custom_call.1} parent=1 // pred_region
      _
    $region5: #{tpu_custom_call.1} parent=1 // pred_fallthru
      _
    // Predicated region
    $region6: #{tpu_custom_call.1} parent=1 // pred_check
      _
    $region7: #{tpu_custom_call.1} parent=1 // pred_check_branch
      %11 = sbr.rel (0) target = $region9
    $region8: #{tpu_custom_call.1} parent=1 // pred_region
      _
    $region9: #{tpu_custom_call.1} parent=1 // pred_fallthru
      _
    %p12 = scmp.eq.s32.totalorder 0, 0
    // Predicated region
    $region10: #{tpu_custom_call.1} parent=1 // pred_check
      %p13 = pneg %p12
    $region11: #{tpu_custom_call.1} parent=1 // pred_check_branch
      %15 = sbr.rel (%p13) target = $region13
    $region12: #{tpu_custom_call.1} parent=1 // pred_region
      %vm16 = vcmask 130048
      %17 = vst.msk [vmem:[#allocation2] sm:$0xff] %vm16, 0.0
    $region13: #{tpu_custom_call.1} parent=1 // pred_fallthru
      _
    %v18 = vld [vmem:[%s0] sm:$0xff]
    %v19 = vld [vmem:[%s1] sm:$0xff]
    %v20 = vlaneseq
    %v21 = vand.u32 %v20, 127
    %22 = vset.pattern.permute.xlu0 0
    %23 = vperm.xlu0 %22, %v19
    %v24 = vpop.permute.xlu0 %23
    %vm25 = vcmp.lt.s32.totalorder %v21, %v24
    %v26 = vsub.f32 1.0, %v18
    %v27 = vsel %vm25, %v18, %v26
    %v28 = vlog2.pop %v27
    %v29 = vmul.f32 %v28, 0.6931472
    %v30 = vmax.f32 %v29, -100.0
    %v31 = vsub.f32 0.0, %v30
    %v32 = vld [vmem:[#allocation2] sm:$0xff]
    %v33 = vadd.f32 %v32, %v31
    %vm34 = vcmask 130048
    %35 = vst.msk [vmem:[#allocation2] sm:$0xff] %vm34, %v33
    // Predicated region
    $region14: #{tpu_custom_call.1} parent=1 // pred_check
      %p36 = pneg %p12
    $region15: #{tpu_custom_call.1} parent=1 // pred_check_branch
      %38 = sbr.rel (%p36) target = $region17
    $region16: #{tpu_custom_call.1} parent=1 // pred_region
      %v39 = vld [vmem:[#allocation2] sm:$0xff]
      %v40 = vsel %vm34, %v39, 0.0
      %41 = vadd.xlane.f32.xlu0 %v40
      %v42 = vpop.xlane.xlu0 %41
      %v43 = vrot.slane %v42, 4
      %v44 = vadd.f32 %v42, %v43
      %v45 = vrot.slane %v44, 2
      %v46 = vadd.f32 %v44, %v45
      %v47 = vrot.slane %v46, 1
      %v48 = vadd.f32 %v46, %v47
      %s49 = vtos %v48
      %s50 = smul.f32 %s49, 0.0078125
      %s51 = scalar_lea.smem [#allocation3], 0
      %52 = sst [smem:[%s51]] %s50
    $region17: #{tpu_custom_call.1} parent=1 // pred_fallthru
      _
    // Predicated region
    $region18: #{tpu_custom_call.1} parent=1 // pred_check
      _
    $region19: #{tpu_custom_call.1} parent=1 // pred_check_branch
      %54 = sbr.rel (0) target = $region21
    $region20: #{tpu_custom_call.1} parent=1 // pred_region
      %s56 = ssub.s32 16, 16
      %57 = vsyncadd [#allocation4], %s56
      %60 = dma.smem_to_hbm [#allocation3], 16, %s2, [#allocation4]
    $region21: #{tpu_custom_call.1} parent=1 // pred_fallthru
      _
    // Predicated region
    $region22: #{tpu_custom_call.1} parent=1 // pred_check
      _
    $region23: #{tpu_custom_call.1} parent=1 // pred_check_branch
      %62 = sbr.rel (0) target = $region25
    $region24: #{tpu_custom_call.1} parent=1 // pred_region
      %63 = dma.done [#allocation4], 16
    $region25: #{tpu_custom_call.1} parent=1 // pred_fallthru
      _
    %64 = sfence
    %65 = vsyncpa [#allocation4], 1

</llo_original>
